<compile_context>
chip_gen: v7x
topology: tpu7x:2x2x1
jax: 0.10.0
libtpu: 0.0.40
codegen_flags: <defaults>
</compile_context>

<pallas_src>
import functools

import jax
import jax.numpy as jnp
from jax.experimental import pallas as pl
from jax.experimental.pallas import tpu as pltpu


_VMEM_BUDGET_BYTES = 20 * 1024 * 1024   # conservative per-step footprint target
_VMEM_LIMIT_BYTES = 32 * 1024 * 1024    # <= physical VMEM on v5e/v6e/v7x


# ----------------------------- Pallas kernel -------------------------------

def _decoder_kernel(*refs, n_layers):
    """refs = (x_ref, w0, b0, w1, b1, ..., w_{L-1}, b_{L-1}, o_ref).

    o = relu(((x @ w0 + b0) @ w1 + b1) ... @ w_{L-1} + b_{L-1})
    bf16 MXU operands, f32 accumulation; intermediates never leave VMEM/vregs.
    """
    x_ref = refs[0]
    o_ref = refs[-1]
    h = x_ref[...]                                   # bf16 row tile
    for i in range(n_layers):
        w = refs[1 + 2 * i][...]                     # bf16, lane-padded
        b = refs[2 + 2 * i][...]                     # (1, fout_pad) f32
        h = jnp.dot(h.astype(w.dtype), w,
                    preferred_element_type=jnp.float32) + b
    o_ref[...] = jnp.maximum(h, 0.0).astype(o_ref.dtype)


# ------------------------------ helpers -------------------------------------

def _round_up(x, m):
    return ((x + m - 1) // m) * m


def _num_tensorcores_per_chip():
    try:
        kind = jax.devices()[0].device_kind.lower()
    except Exception:
        return 1
    # v4 / v5p (megacore) and v7x have 2 TensorCores per chip.
    return 2 if any(t in kind for t in ("v4", "v5p", "v7", "7x")) else 1


def _pad_and_cast_params(params):
    """Pad every fan-in/fan-out to a multiple of 128; weights -> bf16, bias f32."""
    out = []
    for w, b in params:
        fin, fout = w.shape
        fin_p, fout_p = _round_up(fin, 128), _round_up(fout, 128)
        w_p = jnp.pad(w.astype(jnp.bfloat16),
                      ((0, fin_p - fin), (0, fout_p - fout)))
        b2 = jnp.asarray(b, jnp.float32).reshape(1, -1)
        b_p = jnp.pad(b2, ((0, 0), (0, fout_p - fout)))
        out.append((w_p, b_p))
    return out


def _vmem_footprint_bytes(tile_m, f_pad, padded_params, n_out_pad):
    x_bytes = tile_m * f_pad * 2 * 2                        # bf16 x tile, 2x buffered
    o_bytes = tile_m * n_out_pad * 4 * 2                    # f32 out tile, 2x buffered
    wb_bytes = sum(w.size * 2 + b.size * 4 for w, b in padded_params) * 2
    max_w = max(w.shape[1] for w, _ in padded_params)
    inter = tile_m * max_w * 4 * 4                          # f32 temporaries + slack
    return x_bytes + o_bytes + wb_bytes + inter


def _pick_tile_m(B, f_pad, padded_params, n_out_pad, max_tile_m):
    if B <= 8:
        return B                       # single whole-batch tile (full-dim block)
    min_steps = 2 if (_num_tensorcores_per_chip() >= 2 and B >= 16) else 1
    tile_m = min(_round_up(max_tile_m, 8), _round_up(pl.cdiv(B, min_steps), 8))
    tile_m = max(8, tile_m)
    while tile_m > 8 and _vmem_footprint_bytes(
            tile_m, f_pad, padded_params, n_out_pad) > _VMEM_BUDGET_BYTES:
        tile_m = max(8, _round_up(tile_m // 2, 8))
    return tile_m


# ------------------------------- wrapper ------------------------------------

def decoder_forward(x, params, *, max_tile_m=1024):
    """x: (B, ...) -> flattened to (B, in_features), exactly like torch .view.

    params: list of (w, b) with w: (fin, fout) f32, b: (1, fout) f32.
    """
    B = x.shape[0]
    x2 = x.reshape(B, -1)
    in_features = x2.shape[1]
    n_layers = len(params)
    n_classes = params[-1][0].shape[1]

    padded = _pad_and_cast_params(params)
    f_pad = padded[0][0].shape[0]
    n_out_pad = padded[-1][0].shape[1]

    # bf16 activations at the boundary; zero-pad the feature dim to 128 lanes.
    x2p = jnp.pad(x2.astype(jnp.bfloat16), ((0, 0), (0, f_pad - in_features)))

    tile_m = _pick_tile_m(B, f_pad, padded, n_out_pad, max_tile_m)
    grid = (pl.cdiv(B, tile_m),)

    x_spec = pl.BlockSpec((tile_m, f_pad), lambda i: (i, 0))
    wb_specs, flat_wb = [], []
    for w, b in padded:
        # Grid-invariant index_maps -> weights/biases stay resident in VMEM.
        wb_specs.append(pl.BlockSpec(w.shape, lambda i: (0, 0)))
        wb_specs.append(pl.BlockSpec(b.shape, lambda i: (0, 0)))
        flat_wb.extend([w, b])
    out_spec = pl.BlockSpec((tile_m, n_out_pad), lambda i: (i, 0))

    flops = 2 * B * sum(w.shape[0] * w.shape[1] for w, _ in padded)
    bytes_accessed = (x2p.size * 2 + B * n_out_pad * 4
                      + sum(w.size * 2 + b.size * 4 for w, b in padded))
    cost = pl.CostEstimate(flops=flops, transcendentals=0,
                           bytes_accessed=bytes_accessed)

    kernel = functools.partial(_decoder_kernel, n_layers=n_layers)
    out_pad = pl.pallas_call(
        kernel,
        out_shape=jax.ShapeDtypeStruct((B, n_out_pad), jnp.float32),
        grid=grid,
        in_specs=[x_spec] + wb_specs,
        out_specs=out_spec,
        compiler_params=pltpu.CompilerParams(
            dimension_semantics=("parallel",),
            vmem_limit_bytes=_VMEM_LIMIT_BYTES),
        cost_estimate=cost,
    )(x2p, *flat_wb)

    return out_pad[:, :n_classes]


# ------------------------------ param init ----------------------------------

def init_decoder_params(key, in_features, n_classes, blocks_sizes):
    """Matches torch.nn.Linear default init: U(-1/sqrt(fin), 1/sqrt(fin))."""
    sizes = [in_features] + list(blocks_sizes) + [n_classes]
    params = []
    for fin, fout in zip(sizes[:-1], sizes[1:]):
        key, kw, kb = jax.random.split(key, 3)
        bound = 1.0 / float(fin) ** 0.5
        w = jax.random.uniform(kw, (fin, fout), jnp.float32, -bound, bound)
        b = jax.random.uniform(kb, (1, fout), jnp.float32, -bound, bound)
        params.append((w, b))
    return params


# --------------------------------- main --------------------------------------

if __name__ == "__main__":
    key = jax.random.PRNGKey(0)
    kx, kp = jax.random.split(key)

    # Decoder(in_features=1024, n_classes=10, blocks_sizes=[256, 128]);
    # input is any (B, ...) tensor, flattened inside forward().
    B, C, H, W = 2, 4, 16, 16
    in_features = C * H * W              # 1024
    blocks_sizes = [256, 128]
    n_classes = 10

    x = jax.random.normal(kx, (B, C, H, W), jnp.float32)
    params = init_decoder_params(kp, in_features, n_classes, blocks_sizes)

    fwd = jax.jit(decoder_forward)
    out = fwd(x, params)
    jax.block_until_ready(out)

    # Matched-precision reference (bf16 operands, f32 accumulation).
    h = x.reshape(B, -1)
    for w, b in params:
        h = jnp.dot(h.astype(jnp.bfloat16), w.astype(jnp.bfloat16),
                    preferred_element_type=jnp.float32) + b
    ref_bf16 = jnp.maximum(h, 0.0)

    # Full-f32 reference (original module semantics) for a sanity check.
    h32 = x.reshape(B, -1)
    for w, b in params:
        h32 = jnp.dot(h32, w, precision=jax.lax.Precision.HIGHEST) + b
    ref_f32 = jnp.maximum(h32, 0.0)

    assert out.shape == (B, n_classes)
    assert bool(jnp.all(out >= 0.0))                                  # final ReLU
    assert bool(jnp.allclose(out, ref_bf16, atol=2e-3, rtol=2e-3))    # matched path
    assert bool(jnp.allclose(out, ref_f32, atol=5e-2, rtol=5e-2))     # module semantics
    print("KERNEL_OK")
</pallas_src>

<mosaic_0001>
module attributes {stable_mosaic.version = 11 : i64} {
  func.func @_decoder_kernel(%arg0: i32, %arg1: memref<2x1024xbf16, #tpu.memory_space<vmem>>, %arg2: memref<1024x256xbf16, #tpu.memory_space<vmem>>, %arg3: memref<1x256xf32, #tpu.memory_space<vmem>>, %arg4: memref<256x128xbf16, #tpu.memory_space<vmem>>, %arg5: memref<1x128xf32, #tpu.memory_space<vmem>>, %arg6: memref<128x128xbf16, #tpu.memory_space<vmem>>, %arg7: memref<1x128xf32, #tpu.memory_space<vmem>>, %arg8: memref<2x128xf32, #tpu.memory_space<vmem>>) attributes {dimension_semantics = [#tpu.dimension_semantics<parallel>], iteration_bounds = array<i64: 1>, scalar_prefetch = 0 : i64, scratch_operands = 0 : i64, tpu.core_type = #tpu.core_type<tc>, window_params = [{transform_indices = @transform_0, window_bounds = array<i64: 2, 1024>}, {pipeline_mode = #tpu.pipeline_mode<synchronous>, transform_indices = @transform_1, window_bounds = array<i64: 1024, 256>}, {pipeline_mode = #tpu.pipeline_mode<synchronous>, transform_indices = @transform_2, window_bounds = array<i64: 1, 256>}, {pipeline_mode = #tpu.pipeline_mode<synchronous>, transform_indices = @transform_3, window_bounds = array<i64: 256, 128>}, {pipeline_mode = #tpu.pipeline_mode<synchronous>, transform_indices = @transform_4, window_bounds = array<i64: 1, 128>}, {pipeline_mode = #tpu.pipeline_mode<synchronous>, transform_indices = @transform_5, window_bounds = array<i64: 128, 128>}, {pipeline_mode = #tpu.pipeline_mode<synchronous>, transform_indices = @transform_6, window_bounds = array<i64: 1, 128>}, {transform_indices = @transform_7, window_bounds = array<i64: 2, 128>}]} {
    %c0 = arith.constant 0 : index
    %c0_0 = arith.constant 0 : index
    %0 = vector.load %arg1[%c0, %c0_0] : memref<2x1024xbf16, #tpu.memory_space<vmem>>, vector<2x1024xbf16>
    %c0_1 = arith.constant 0 : index
    %c0_2 = arith.constant 0 : index
    %1 = vector.load %arg2[%c0_1, %c0_2] : memref<1024x256xbf16, #tpu.memory_space<vmem>>, vector<1024x256xbf16>
    %c0_3 = arith.constant 0 : index
    %c0_4 = arith.constant 0 : index
    %2 = vector.load %arg3[%c0_3, %c0_4] : memref<1x256xf32, #tpu.memory_space<vmem>>, vector<1x256xf32>
    %cst = arith.constant dense<0.000000e+00> : vector<2x256xf32>
    %3 = tpu.matmul %0, %1, %cst {dimension_numbers = #tpu.dot_dimension_numbers<[1], [0], [0], [1], [0, 0, 1, 1], [], []>} : vector<2x1024xbf16>, vector<1024x256xbf16>, vector<2x256xf32> -> vector<2x256xf32>
    %4 = vector.broadcast %2 : vector<1x256xf32> to vector<2x256xf32>
    %5 = arith.addf %3, %4 : vector<2x256xf32>
    %c0_5 = arith.constant 0 : index
    %c0_6 = arith.constant 0 : index
    %6 = vector.load %arg4[%c0_5, %c0_6] : memref<256x128xbf16, #tpu.memory_space<vmem>>, vector<256x128xbf16>
    %c0_7 = arith.constant 0 : index
    %c0_8 = arith.constant 0 : index
    %7 = vector.load %arg5[%c0_7, %c0_8] : memref<1x128xf32, #tpu.memory_space<vmem>>, vector<1x128xf32>
    %8 = arith.truncf %5 : vector<2x256xf32> to vector<2x256xbf16>
    %cst_9 = arith.constant dense<0.000000e+00> : vector<2x128xf32>
    %9 = tpu.matmul %8, %6, %cst_9 {dimension_numbers = #tpu.dot_dimension_numbers<[1], [0], [0], [1], [0, 0, 1, 1], [], []>} : vector<2x256xbf16>, vector<256x128xbf16>, vector<2x128xf32> -> vector<2x128xf32>
    %10 = vector.broadcast %7 : vector<1x128xf32> to vector<2x128xf32>
    %11 = arith.addf %9, %10 : vector<2x128xf32>
    %c0_10 = arith.constant 0 : index
    %c0_11 = arith.constant 0 : index
    %12 = vector.load %arg6[%c0_10, %c0_11] : memref<128x128xbf16, #tpu.memory_space<vmem>>, vector<128x128xbf16>
    %c0_12 = arith.constant 0 : index
    %c0_13 = arith.constant 0 : index
    %13 = vector.load %arg7[%c0_12, %c0_13] : memref<1x128xf32, #tpu.memory_space<vmem>>, vector<1x128xf32>
    %14 = arith.truncf %11 : vector<2x128xf32> to vector<2x128xbf16>
    %cst_14 = arith.constant dense<0.000000e+00> : vector<2x128xf32>
    %15 = tpu.matmul %14, %12, %cst_14 {dimension_numbers = #tpu.dot_dimension_numbers<[1], [0], [0], [1], [0, 0, 1, 1], [], []>} : vector<2x128xbf16>, vector<128x128xbf16>, vector<2x128xf32> -> vector<2x128xf32>
    %16 = vector.broadcast %13 : vector<1x128xf32> to vector<2x128xf32>
    %17 = arith.addf %15, %16 : vector<2x128xf32>
    %cst_15 = arith.constant 0.000000e+00 : f32
    %18 = vector.broadcast %cst_15 : f32 to vector<2x128xf32>
    %19 = arith.maximumf %17, %18 : vector<2x128xf32>
    %c0_16 = arith.constant 0 : index
    %c0_17 = arith.constant 0 : index
    %20 = vector.load %arg8[%c0_16, %c0_17] : memref<2x128xf32, #tpu.memory_space<vmem>>, vector<2x128xf32>
    tpu.vector_store %arg8[%c0_16, %c0_17], %19 {strides = array<i32>} : memref<2x128xf32, #tpu.memory_space<vmem>>, vector<2x128xf32>,
    return
  }
  func.func @transform_0(%arg0: i32) -> (i32, i32) {
    %c0_i32 = arith.constant 0 : i32
    %c0_i32_0 = arith.constant 0 : i32
    return %arg0, %c0_i32 : i32, i32
  }
  func.func @transform_1(%arg0: i32) -> (i32, i32) {
    %c0_i32 = arith.constant 0 : i32
    %c0_i32_0 = arith.constant 0 : i32
    %c0_i32_1 = arith.constant 0 : i32
    return %c0_i32, %c0_i32_0 : i32, i32
  }
  func.func @transform_2(%arg0: i32) -> (i32, i32) {
    %c0_i32 = arith.constant 0 : i32
    %c0_i32_0 = arith.constant 0 : i32
    %c0_i32_1 = arith.constant 0 : i32
    return %c0_i32, %c0_i32_0 : i32, i32
  }
  func.func @transform_3(%arg0: i32) -> (i32, i32) {
    %c0_i32 = arith.constant 0 : i32
    %c0_i32_0 = arith.constant 0 : i32
    %c0_i32_1 = arith.constant 0 : i32
    return %c0_i32, %c0_i32_0 : i32, i32
  }
  func.func @transform_4(%arg0: i32) -> (i32, i32) {
    %c0_i32 = arith.constant 0 : i32
    %c0_i32_0 = arith.constant 0 : i32
    %c0_i32_1 = arith.constant 0 : i32
    return %c0_i32, %c0_i32_0 : i32, i32
  }
  func.func @transform_5(%arg0: i32) -> (i32, i32) {
    %c0_i32 = arith.constant 0 : i32
    %c0_i32_0 = arith.constant 0 : i32
    %c0_i32_1 = arith.constant 0 : i32
    return %c0_i32, %c0_i32_0 : i32, i32
  }
  func.func @transform_6(%arg0: i32) -> (i32, i32) {
    %c0_i32 = arith.constant 0 : i32
    %c0_i32_0 = arith.constant 0 : i32
    %c0_i32_1 = arith.constant 0 : i32
    return %c0_i32, %c0_i32_0 : i32, i32
  }
  func.func @transform_7(%arg0: i32) -> (i32, i32) {
    %c0_i32 = arith.constant 0 : i32
    %c0_i32_0 = arith.constant 0 : i32
    return %arg0, %c0_i32 : i32, i32
  }
}

</mosaic_0001>

<llo_original>
// kernel: decoder_forward.1
$region0: #{decoder_forward.1}
  #allocation0 [shape = 'u32[]', space=smem, size = 0x4, offset = 0x4, fixed_abs, tag = 'smem constant byte address 0x4 - core index']
  #allocation1 [shape = 'u32[144,128]{1,0:T(1,128)}', space=vmem, size = 0x12000, scoped, tag = 'internal scratch']
  %s0 = inlined_call_operand.vmem [shape: bf16[2,1024], index: 0, kind: input, shape index: {}]
  %s1 = inlined_call_operand.vmem [shape: bf16[1024,256], index: 1, kind: input, shape index: {}]
  %s2 = inlined_call_operand.vmem [shape: f32[1,256], index: 2, kind: input, shape index: {}]
  %s3 = inlined_call_operand.vmem [shape: bf16[256,128], index: 3, kind: input, shape index: {}]
  %s4 = inlined_call_operand.vmem [shape: f32[1,128], index: 4, kind: input, shape index: {}]
  %s5 = inlined_call_operand.vmem [shape: bf16[128,128], index: 5, kind: input, shape index: {}]
  %s6 = inlined_call_operand.vmem [shape: f32[1,128], index: 6, kind: input, shape index: {}]
  %s7 = inlined_call_operand.hbm [shape: f32[2,128], index: 7, kind: output, shape index: {}]
  %s8 = sld [smem:[#allocation0]]
  $region38: #{decoder_forward.1} parent=0
    _
  %s10 = ssub.s32 1, %s8
  %s11 = scalar_select 0, %s10, %s8
  $region1: #{decoder_forward.1} parent=0
    #allocation2 [shape = 'u8[1024]{0}', space=vmem, size = 0x400, scoped, tag = 'output window, operand 0, single buffered']
    #allocation3 [shape = 's32[1]{0}', space=sflag, size = 0x4, scoped, tag = 'scoped memory for decoder_forward.1']
    %12 = vsyncpa [#allocation3], 0
    // Predicated region
    $region2: #{decoder_forward.1} parent=1 // pred_check
      _
    $region3: #{decoder_forward.1} parent=1 // pred_check_branch
      %14 = sbr.rel (0) target = $region5
    $region4: #{decoder_forward.1} parent=1 // pred_region
      _
    $region5: #{decoder_forward.1} parent=1 // pred_fallthru
      _
    // Predicated region
    $region6: #{decoder_forward.1} parent=1 // pred_check
      _
    $region7: #{decoder_forward.1} parent=1 // pred_check_branch
      %16 = sbr.rel (0) target = $region9
    $region8: #{decoder_forward.1} parent=1 // pred_region
      _
    $region9: #{decoder_forward.1} parent=1 // pred_fallthru
      _
    // Predicated region
    $region10: #{decoder_forward.1} parent=1 // pred_check
      _
    $region11: #{decoder_forward.1} parent=1 // pred_check_branch
      %18 = sbr.rel (0) target = $region13
    $region12: #{decoder_forward.1} parent=1 // pred_region
      _
    $region13: #{decoder_forward.1} parent=1 // pred_fallthru
      _
    // Predicated region
    $region14: #{decoder_forward.1} parent=1 // pred_check
      _
    $region15: #{decoder_forward.1} parent=1 // pred_check_branch
      %20 = sbr.rel (0) target = $region17
    $region16: #{decoder_forward.1} parent=1 // pred_region
      _
    $region17: #{decoder_forward.1} parent=1 // pred_fallthru
      _
    // Predicated region
    $region18: #{decoder_forward.1} parent=1 // pred_check
      _
    $region19: #{decoder_forward.1} parent=1 // pred_check_branch
      %22 = sbr.rel (0) target = $region21
    $region20: #{decoder_forward.1} parent=1 // pred_region
      _
    $region21: #{decoder_forward.1} parent=1 // pred_fallthru
      _
    // Predicated region
    $region22: #{decoder_forward.1} parent=1 // pred_check
      _
    $region23: #{decoder_forward.1} parent=1 // pred_check_branch
      %24 = sbr.rel (0) target = $region25
    $region24: #{decoder_forward.1} parent=1 // pred_region
      _
    $region25: #{decoder_forward.1} parent=1 // pred_fallthru
      _
    // Predicated region
    $region26: #{decoder_forward.1} parent=1 // pred_check
      _
    $region27: #{decoder_forward.1} parent=1 // pred_check_branch
      %26 = sbr.rel (0) target = $region29
    $region28: #{decoder_forward.1} parent=1 // pred_region
      _
    $region29: #{decoder_forward.1} parent=1 // pred_fallthru
      _
    %v28 = vld [vmem:[%s0] sm:$0xff]
    %v29 = vld [vmem:[%s1] sm:$0xff]
    %v30 = vld [vmem:[%s1 + $0x8] sm:$0xff]
    %v31 = vld [vmem:[%s1 + $0x10] sm:$0xff]
    %v32 = vld [vmem:[%s1 + $0x18] sm:$0xff]
    %v33 = vld [vmem:[%s1 + $0x20] sm:$0xff]
    %v34 = vld [vmem:[%s1 + $0x28] sm:$0xff]
    %v35 = vld [vmem:[%s1 + $0x30] sm:$0xff]
    %v36 = vld [vmem:[%s1 + $0x38] sm:$0xff]
    %v37 = vld [vmem:[%s1 + $0x40] sm:$0xff]
    %v38 = vld [vmem:[%s1 + $0x48] sm:$0xff]
    %v39 = vld [vmem:[%s1 + $0x50] sm:$0xff]
    %v40 = vld [vmem:[%s1 + $0x58] sm:$0xff]
    %v41 = vld [vmem:[%s1 + $0x60] sm:$0xff]
    %v42 = vld [vmem:[%s1 + $0x68] sm:$0xff]
    %v43 = vld [vmem:[%s1 + $0x70] sm:$0xff]
    %v44 = vld [vmem:[%s1 + $0x78] sm:$0xff]
    %v45 = vld [vmem:[%s1 + $0x80] sm:$0xff]
    %v46 = vld [vmem:[%s1 + $0x88] sm:$0xff]
    %v47 = vld [vmem:[%s1 + $0x90] sm:$0xff]
    %v48 = vld [vmem:[%s1 + $0x98] sm:$0xff]
    %v49 = vld [vmem:[%s1 + $0xa0] sm:$0xff]
    %v50 = vld [vmem:[%s1 + $0xa8] sm:$0xff]
    %v51 = vld [vmem:[%s1 + $0xb0] sm:$0xff]
    %v52 = vld [vmem:[%s1 + $0xb8] sm:$0xff]
    %v53 = vld [vmem:[%s1 + $0xc0] sm:$0xff]
    %v54 = vld [vmem:[%s1 + $0xc8] sm:$0xff]
    %v55 = vld [vmem:[%s1 + $0xd0] sm:$0xff]
    %v56 = vld [vmem:[%s1 + $0xd8] sm:$0xff]
    %v57 = vld [vmem:[%s1 + $0xe0] sm:$0xff]
    %v58 = vld [vmem:[%s1 + $0xe8] sm:$0xff]
    %v59 = vld [vmem:[%s1 + $0xf0] sm:$0xff]
    %v60 = vld [vmem:[%s1 + $0xf8] sm:$0xff]
    %v61 = vld [vmem:[%s1 + $0x100] sm:$0xff]
    %v62 = vld [vmem:[%s1 + $0x108] sm:$0xff]
    %v63 = vld [vmem:[%s1 + $0x110] sm:$0xff]
    %v64 = vld [vmem:[%s1 + $0x118] sm:$0xff]
    %v65 = vld [vmem:[%s1 + $0x120] sm:$0xff]
    %v66 = vld [vmem:[%s1 + $0x128] sm:$0xff]
    %v67 = vld [vmem:[%s1 + $0x130] sm:$0xff]
    %v68 = vld [vmem:[%s1 + $0x138] sm:$0xff]
    %v69 = vld [vmem:[%s1 + $0x140] sm:$0xff]
    %v70 = vld [vmem:[%s1 + $0x148] sm:$0xff]
    %v71 = vld [vmem:[%s1 + $0x150] sm:$0xff]
    %v72 = vld [vmem:[%s1 + $0x158] sm:$0xff]
    %v73 = vld [vmem:[%s1 + $0x160] sm:$0xff]
    %v74 = vld [vmem:[%s1 + $0x168] sm:$0xff]
    %v75 = vld [vmem:[%s1 + $0x170] sm:$0xff]
    %v76 = vld [vmem:[%s1 + $0x178] sm:$0xff]
    %v77 = vld [vmem:[%s1 + $0x180] sm:$0xff]
    %v78 = vld [vmem:[%s1 + $0x188] sm:$0xff]
    %v79 = vld [vmem:[%s1 + $0x190] sm:$0xff]
    %v80 = vld [vmem:[%s1 + $0x198] sm:$0xff]
    %v81 = vld [vmem:[%s1 + $0x1a0] sm:$0xff]
    %v82 = vld [vmem:[%s1 + $0x1a8] sm:$0xff]
    %v83 = vld [vmem:[%s1 + $0x1b0] sm:$0xff]
    %v84 = vld [vmem:[%s1 + $0x1b8] sm:$0xff]
    %v85 = vld [vmem:[%s1 + $0x1c0] sm:$0xff]
    %v86 = vld [vmem:[%s1 + $0x1c8] sm:$0xff]
    %v87 = vld [vmem:[%s1 + $0x1d0] sm:$0xff]
    %v88 = vld [vmem:[%s1 + $0x1d8] sm:$0xff]
    %v89 = vld [vmem:[%s1 + $0x1e0] sm:$0xff]
    %v90 = vld [vmem:[%s1 + $0x1e8] sm:$0xff]
    %v91 = vld [vmem:[%s1 + $0x1f0] sm:$0xff]
    %v92 = vld [vmem:[%s1 + $0x1f8] sm:$0xff]
    %v93 = vld [vmem:[%s1 + $0x200] sm:$0xff]
    %v94 = vld [vmem:[%s1 + $0x208] sm:$0xff]
    %v95 = vld [vmem:[%s1 + $0x210] sm:$0xff]
    %v96 = vld [vmem:[%s1 + $0x218] sm:$0xff]
    %v97 = vld [vmem:[%s1 + $0x220] sm:$0xff]
    %v98 = vld [vmem:[%s1 + $0x228] sm:$0xff]
    %v99 = vld [vmem:[%s1 + $0x230] sm:$0xff]
    %v100 = vld [vmem:[%s1 + $0x238] sm:$0xff]
    %v101 = vld [vmem:[%s1 + $0x240] sm:$0xff]
    %v102 = vld [vmem:[%s1 + $0x248] sm:$0xff]
    %v103 = vld [vmem:[%s1 + $0x250] sm:$0xff]
    %v104 = vld [vmem:[%s1 + $0x258] sm:$0xff]
    %v105 = vld [vmem:[%s1 + $0x260] sm:$0xff]
    %v106 = vld [vmem:[%s1 + $0x268] sm:$0xff]
    %v107 = vld [vmem:[%s1 + $0x270] sm:$0xff]
    %v108 = vld [vmem:[%s1 + $0x278] sm:$0xff]
    %v109 = vld [vmem:[%s1 + $0x280] sm:$0xff]
    %v110 = vld [vmem:[%s1 + $0x288] sm:$0xff]
    %v111 = vld [vmem:[%s1 + $0x290] sm:$0xff]
    %v112 = vld [vmem:[%s1 + $0x298] sm:$0xff]
    %v113 = vld [vmem:[%s1 + $0x2a0] sm:$0xff]
    %v114 = vld [vmem:[%s1 + $0x2a8] sm:$0xff]
    %v115 = vld [vmem:[%s1 + $0x2b0] sm:$0xff]
    %v116 = vld [vmem:[%s1 + $0x2b8] sm:$0xff]
    %v117 = vld [vmem:[%s1 + $0x2c0] sm:$0xff]
    %v118 = vld [vmem:[%s1 + $0x2c8] sm:$0xff]
    %v119 = vld [vmem:[%s1 + $0x2d0] sm:$0xff]
    %v120 = vld [vmem:[%s1 + $0x2d8] sm:$0xff]
    %v121 = vld [vmem:[%s1 + $0x2e0] sm:$0xff]
    %v122 = vld [vmem:[%s1 + $0x2e8] sm:$0xff]
    %v123 = vld [vmem:[%s1 + $0x2f0] sm:$0xff]
    %v124 = vld [vmem:[%s1 + $0x2f8] sm:$0xff]
    %v125 = vld [vmem:[%s1 + $0x300] sm:$0xff]
    %v126 = vld [vmem:[%s1 + $0x308] sm:$0xff]
    %v127 = vld [vmem:[%s1 + $0x310] sm:$0xff]
    %v128 = vld [vmem:[%s1 + $0x318] sm:$0xff]
    %v129 = vld [vmem:[%s1 + $0x320] sm:$0xff]
    %v130 = vld [vmem:[%s1 + $0x328] sm:$0xff]
    %v131 = vld [vmem:[%s1 + $0x330] sm:$0xff]
    %v132 = vld [vmem:[%s1 + $0x338] sm:$0xff]
    %v133 = vld [vmem:[%s1 + $0x340] sm:$0xff]
    %v134 = vld [vmem:[%s1 + $0x348] sm:$0xff]
    %v135 = vld [vmem:[%s1 + $0x350] sm:$0xff]
    %v136 = vld [vmem:[%s1 + $0x358] sm:$0xff]
    %v137 = vld [vmem:[%s1 + $0x360] sm:$0xff]
    %v138 = vld [vmem:[%s1 + $0x368] sm:$0xff]
    %v139 = vld [vmem:[%s1 + $0x370] sm:$0xff]
    %v140 = vld [vmem:[%s1 + $0x378] sm:$0xff]
    %v141 = vld [vmem:[%s1 + $0x380] sm:$0xff]
    %v142 = vld [vmem:[%s1 + $0x388] sm:$0xff]
    %v143 = vld [vmem:[%s1 + $0x390] sm:$0xff]
    %v144 = vld [vmem:[%s1 + $0x398] sm:$0xff]
    %v145 = vld [vmem:[%s1 + $0x3a0] sm:$0xff]
    %v146 = vld [vmem:[%s1 + $0x3a8] sm:$0xff]
    %v147 = vld [vmem:[%s1 + $0x3b0] sm:$0xff]
    %v148 = vld [vmem:[%s1 + $0x3b8] sm:$0xff]
    %v149 = vld [vmem:[%s1 + $0x3c0] sm:$0xff]
    %v150 = vld [vmem:[%s1 + $0x3c8] sm:$0xff]
    %v151 = vld [vmem:[%s1 + $0x3d0] sm:$0xff]
    %v152 = vld [vmem:[%s1 + $0x3d8] sm:$0xff]
    %v153 = vld [vmem:[%s1 + $0x3e0] sm:$0xff]
    %v154 = vld [vmem:[%s1 + $0x3e8] sm:$0xff]
    %v155 = vld [vmem:[%s1 + $0x3f0] sm:$0xff]
    %v156 = vld [vmem:[%s1 + $0x3f8] sm:$0xff]
    %v157 = vld [vmem:[%s2] sm:$0x3]
    %v159 = vlaneseq
    %v160 = vshrl.u32 %v159, 7
    %v161 = vsub.s32 0, %v160
    %v162 = vrot.slane %v157, %v161
    %v163 = vlaneseq
    %v164 = vshrl.u32 %v163, 7
    %v165 = vsub.s32 1, %v164
    %v166 = vrot.slane %v157, %v165
    %v170 = vcombine.high %v28, %v28
    %v172 = vunpack.c.l.s4 1966171168
    %v173 = vunpack.c.0.s8 %v172
    %v174 = vlaneseq
    %v175 = vshrl.u32 %v174, 7
    %v176 = vsub.s32 %v173, %v175
    %v177 = vrot.slane %v28, %v176
    %v179 = vunpack.c.l.s4 1966171168
    %v180 = vunpack.c.0.s8 %v179
    %v181 = vlaneseq
    %v182 = vshrl.u32 %v181, 7
    %v183 = vsub.s32 %v180, %v182
    %v184 = vrot.slane %v170, %v183
    %v185 = vcombine.high %v177, %v177
    %v186 = vcombine.high %v184, %v184
    %v188 = vunpack.c.l.s4 1966171168
    %v189 = vunpack.c.0.s8 %v188
    %v190 = vlaneseq
    %v191 = vshrl.u32 %v190, 7
    %v192 = vsub.s32 %v189, %v191
    %v193 = vrot.slane %v177, %v192
    %v195 = vunpack.c.l.s4 1966171168
    %v196 = vunpack.c.0.s8 %v195
    %v197 = vlaneseq
    %v198 = vshrl.u32 %v197, 7
    %v199 = vsub.s32 %v196, %v198
    %v200 = vrot.slane %v184, %v199
    %v202 = vunpack.c.l.s4 1966171168
    %v203 = vunpack.c.0.s8 %v202
    %v204 = vlaneseq
    %v205 = vshrl.u32 %v204, 7
    %v206 = vsub.s32 %v203, %v205
    %v207 = vrot.slane %v185, %v206
    %v209 = vunpack.c.l.s4 1966171168
    %v210 = vunpack.c.0.s8 %v209
    %v211 = vlaneseq
    %v212 = vshrl.u32 %v211, 7
    %v213 = vsub.s32 %v210, %v212
    %v214 = vrot.slane %v186, %v213
    %v215 = vcombine.high %v193, %v193
    %v216 = vcombine.high %v200, %v200
    %v217 = vcombine.high %v207, %v207
    %v218 = vcombine.high %v214, %v214
    %v355 = vunpack.c.l.b16 %v29
    %v356 = vunpack.c.h.b16 %v29
    %v357 = vunpack.c.l.b16 %v30
    %v358 = vunpack.c.h.b16 %v30
    %v359 = vunpack.c.l.b16 %v31
    %v360 = vunpack.c.h.b16 %v31
    %v361 = vunpack.c.l.b16 %v32
    %v362 = vunpack.c.h.b16 %v32
    %v363 = vunpack.c.l.b16 %v33
    %v364 = vunpack.c.h.b16 %v33
    %v365 = vunpack.c.l.b16 %v34
    %v366 = vunpack.c.h.b16 %v34
    %v367 = vunpack.c.l.b16 %v35
    %v368 = vunpack.c.h.b16 %v35
    %v369 = vunpack.c.l.b16 %v36
    %v370 = vunpack.c.h.b16 %v36
    %v371 = vunpack.c.l.b16 %v37
    %v372 = vunpack.c.h.b16 %v37
    %v373 = vunpack.c.l.b16 %v38
    %v374 = vunpack.c.h.b16 %v38
    %v375 = vunpack.c.l.b16 %v39
    %v376 = vunpack.c.h.b16 %v39
    %v377 = vunpack.c.l.b16 %v40
    %v378 = vunpack.c.h.b16 %v40
    %v379 = vunpack.c.l.b16 %v41
    %v380 = vunpack.c.h.b16 %v41
    %v381 = vunpack.c.l.b16 %v42
    %v382 = vunpack.c.h.b16 %v42
    %v383 = vunpack.c.l.b16 %v43
    %v384 = vunpack.c.h.b16 %v43
    %v385 = vunpack.c.l.b16 %v44
    %v386 = vunpack.c.h.b16 %v44
    %v387 = vunpack.c.l.b16 %v45
    %v388 = vunpack.c.h.b16 %v45
    %v389 = vunpack.c.l.b16 %v46
    %v390 = vunpack.c.h.b16 %v46
    %v391 = vunpack.c.l.b16 %v47
    %v392 = vunpack.c.h.b16 %v47
    %v393 = vunpack.c.l.b16 %v48
    %v394 = vunpack.c.h.b16 %v48
    %v395 = vunpack.c.l.b16 %v49
    %v396 = vunpack.c.h.b16 %v49
    %v397 = vunpack.c.l.b16 %v50
    %v398 = vunpack.c.h.b16 %v50
    %v399 = vunpack.c.l.b16 %v51
    %v400 = vunpack.c.h.b16 %v51
    %v401 = vunpack.c.l.b16 %v52
    %v402 = vunpack.c.h.b16 %v52
    %v403 = vunpack.c.l.b16 %v53
    %v404 = vunpack.c.h.b16 %v53
    %v405 = vunpack.c.l.b16 %v54
    %v406 = vunpack.c.h.b16 %v54
    %v407 = vunpack.c.l.b16 %v55
    %v408 = vunpack.c.h.b16 %v55
    %v409 = vunpack.c.l.b16 %v56
    %v410 = vunpack.c.h.b16 %v56
    %v411 = vunpack.c.l.b16 %v57
    %v412 = vunpack.c.h.b16 %v57
    %v413 = vunpack.c.l.b16 %v58
    %v414 = vunpack.c.h.b16 %v58
    %v415 = vunpack.c.l.b16 %v59
    %v416 = vunpack.c.h.b16 %v59
    %v417 = vunpack.c.l.b16 %v60
    %v418 = vunpack.c.h.b16 %v60
    %v419 = vunpack.c.l.b16 %v61
    %v420 = vunpack.c.h.b16 %v61
    %v421 = vunpack.c.l.b16 %v62
    %v422 = vunpack.c.h.b16 %v62
    %v423 = vunpack.c.l.b16 %v63
    %v424 = vunpack.c.h.b16 %v63
    %v425 = vunpack.c.l.b16 %v64
    %v426 = vunpack.c.h.b16 %v64
    %v427 = vunpack.c.l.b16 %v65
    %v428 = vunpack.c.h.b16 %v65
    %v429 = vunpack.c.l.b16 %v66
    %v430 = vunpack.c.h.b16 %v66
    %v431 = vunpack.c.l.b16 %v67
    %v432 = vunpack.c.h.b16 %v67
    %v433 = vunpack.c.l.b16 %v68
    %v434 = vunpack.c.h.b16 %v68
    %v435 = vunpack.c.l.b16 %v69
    %v436 = vunpack.c.h.b16 %v69
    %v437 = vunpack.c.l.b16 %v70
    %v438 = vunpack.c.h.b16 %v70
    %v439 = vunpack.c.l.b16 %v71
    %v440 = vunpack.c.h.b16 %v71
    %v441 = vunpack.c.l.b16 %v72
    %v442 = vunpack.c.h.b16 %v72
    %v443 = vunpack.c.l.b16 %v73
    %v444 = vunpack.c.h.b16 %v73
    %v445 = vunpack.c.l.b16 %v74
    %v446 = vunpack.c.h.b16 %v74
    %v447 = vunpack.c.l.b16 %v75
    %v448 = vunpack.c.h.b16 %v75
    %v449 = vunpack.c.l.b16 %v76
    %v450 = vunpack.c.h.b16 %v76
    %v451 = vunpack.c.l.b16 %v77
    %v452 = vunpack.c.h.b16 %v77
    %v453 = vunpack.c.l.b16 %v78
    %v454 = vunpack.c.h.b16 %v78
    %v455 = vunpack.c.l.b16 %v79
    %v456 = vunpack.c.h.b16 %v79
    %v457 = vunpack.c.l.b16 %v80
    %v458 = vunpack.c.h.b16 %v80
    %v459 = vunpack.c.l.b16 %v81
    %v460 = vunpack.c.h.b16 %v81
    %v461 = vunpack.c.l.b16 %v82
    %v462 = vunpack.c.h.b16 %v82
    %v463 = vunpack.c.l.b16 %v83
    %v464 = vunpack.c.h.b16 %v83
    %v465 = vunpack.c.l.b16 %v84
    %v466 = vunpack.c.h.b16 %v84
    %v467 = vunpack.c.l.b16 %v85
    %v468 = vunpack.c.h.b16 %v85
    %v469 = vunpack.c.l.b16 %v86
    %v470 = vunpack.c.h.b16 %v86
    %v471 = vunpack.c.l.b16 %v87
    %v472 = vunpack.c.h.b16 %v87
    %v473 = vunpack.c.l.b16 %v88
    %v474 = vunpack.c.h.b16 %v88
    %v475 = vunpack.c.l.b16 %v89
    %v476 = vunpack.c.h.b16 %v89
    %v477 = vunpack.c.l.b16 %v90
    %v478 = vunpack.c.h.b16 %v90
    %v479 = vunpack.c.l.b16 %v91
    %v480 = vunpack.c.h.b16 %v91
    %v481 = vunpack.c.l.b16 %v92
    %v482 = vunpack.c.h.b16 %v92
    %v483 = vunpack.c.l.b16 %v93
    %v484 = vunpack.c.h.b16 %v93
    %v485 = vunpack.c.l.b16 %v94
    %v486 = vunpack.c.h.b16 %v94
    %v487 = vunpack.c.l.b16 %v95
    %v488 = vunpack.c.h.b16 %v95
    %v489 = vunpack.c.l.b16 %v96
    %v490 = vunpack.c.h.b16 %v96
    %v491 = vunpack.c.l.b16 %v97
    %v492 = vunpack.c.h.b16 %v97
    %v493 = vunpack.c.l.b16 %v98
    %v494 = vunpack.c.h.b16 %v98
    %v495 = vunpack.c.l.b16 %v99
    %v496 = vunpack.c.h.b16 %v99
    %v497 = vunpack.c.l.b16 %v100
    %v498 = vunpack.c.h.b16 %v100
    %v499 = vunpack.c.l.b16 %v101
    %v500 = vunpack.c.h.b16 %v101
    %v501 = vunpack.c.l.b16 %v102
    %v502 = vunpack.c.h.b16 %v102
    %v503 = vunpack.c.l.b16 %v103
    %v504 = vunpack.c.h.b16 %v103
    %v505 = vunpack.c.l.b16 %v104
    %v506 = vunpack.c.h.b16 %v104
    %v507 = vunpack.c.l.b16 %v105
    %v508 = vunpack.c.h.b16 %v105
    %v509 = vunpack.c.l.b16 %v106
    %v510 = vunpack.c.h.b16 %v106
    %v511 = vunpack.c.l.b16 %v107
    %v512 = vunpack.c.h.b16 %v107
    %v513 = vunpack.c.l.b16 %v108
    %v514 = vunpack.c.h.b16 %v108
    %v515 = vunpack.c.l.b16 %v109
    %v516 = vunpack.c.h.b16 %v109
    %v517 = vunpack.c.l.b16 %v110
    %v518 = vunpack.c.h.b16 %v110
    %v519 = vunpack.c.l.b16 %v111
    %v520 = vunpack.c.h.b16 %v111
    %v521 = vunpack.c.l.b16 %v112
    %v522 = vunpack.c.h.b16 %v112
    %v523 = vunpack.c.l.b16 %v113
    %v524 = vunpack.c.h.b16 %v113
    %v525 = vunpack.c.l.b16 %v114
    %v526 = vunpack.c.h.b16 %v114
    %v527 = vunpack.c.l.b16 %v115
    %v528 = vunpack.c.h.b16 %v115
    %v529 = vunpack.c.l.b16 %v116
    %v530 = vunpack.c.h.b16 %v116
    %v531 = vunpack.c.l.b16 %v117
    %v532 = vunpack.c.h.b16 %v117
    %v533 = vunpack.c.l.b16 %v118
    %v534 = vunpack.c.h.b16 %v118
    %v535 = vunpack.c.l.b16 %v119
    %v536 = vunpack.c.h.b16 %v119
    %v537 = vunpack.c.l.b16 %v120
    %v538 = vunpack.c.h.b16 %v120
    %v539 = vunpack.c.l.b16 %v121
    %v540 = vunpack.c.h.b16 %v121
    %v541 = vunpack.c.l.b16 %v122
    %v542 = vunpack.c.h.b16 %v122
    %v543 = vunpack.c.l.b16 %v123
    %v544 = vunpack.c.h.b16 %v123
    %v545 = vunpack.c.l.b16 %v124
    %v546 = vunpack.c.h.b16 %v124
    %v547 = vunpack.c.l.b16 %v125
    %v548 = vunpack.c.h.b16 %v125
    %v549 = vunpack.c.l.b16 %v126
    %v550 = vunpack.c.h.b16 %v126
    %v551 = vunpack.c.l.b16 %v127
    %v552 = vunpack.c.h.b16 %v127
    %v553 = vunpack.c.l.b16 %v128
    %v554 = vunpack.c.h.b16 %v128
    %v555 = vunpack.c.l.b16 %v129
    %v556 = vunpack.c.h.b16 %v129
    %v557 = vunpack.c.l.b16 %v130
    %v558 = vunpack.c.h.b16 %v130
    %v559 = vunpack.c.l.b16 %v131
    %v560 = vunpack.c.h.b16 %v131
    %v561 = vunpack.c.l.b16 %v132
    %v562 = vunpack.c.h.b16 %v132
    %v563 = vunpack.c.l.b16 %v133
    %v564 = vunpack.c.h.b16 %v133
    %v565 = vunpack.c.l.b16 %v134
    %v566 = vunpack.c.h.b16 %v134
    %v567 = vunpack.c.l.b16 %v135
    %v568 = vunpack.c.h.b16 %v135
    %v569 = vunpack.c.l.b16 %v136
    %v570 = vunpack.c.h.b16 %v136
    %v571 = vunpack.c.l.b16 %v137
    %v572 = vunpack.c.h.b16 %v137
    %v573 = vunpack.c.l.b16 %v138
    %v574 = vunpack.c.h.b16 %v138
    %v575 = vunpack.c.l.b16 %v139
    %v576 = vunpack.c.h.b16 %v139
    %v577 = vunpack.c.l.b16 %v140
    %v578 = vunpack.c.h.b16 %v140
    %v579 = vunpack.c.l.b16 %v141
    %v580 = vunpack.c.h.b16 %v141
    %v581 = vunpack.c.l.b16 %v142
    %v582 = vunpack.c.h.b16 %v142
    %v583 = vunpack.c.l.b16 %v143
    %v584 = vunpack.c.h.b16 %v143
    %v585 = vunpack.c.l.b16 %v144
    %v586 = vunpack.c.h.b16 %v144
    %v587 = vunpack.c.l.b16 %v145
    %v588 = vunpack.c.h.b16 %v145
    %v589 = vunpack.c.l.b16 %v146
    %v590 = vunpack.c.h.b16 %v146
    %v591 = vunpack.c.l.b16 %v147
    %v592 = vunpack.c.h.b16 %v147
    %v593 = vunpack.c.l.b16 %v148
    %v594 = vunpack.c.h.b16 %v148
    %v595 = vunpack.c.l.b16 %v149
    %v596 = vunpack.c.h.b16 %v149
    %v597 = vunpack.c.l.b16 %v150
    %v598 = vunpack.c.h.b16 %v150
    %v599 = vunpack.c.l.b16 %v151
    %v600 = vunpack.c.h.b16 %v151
    %v601 = vunpack.c.l.b16 %v152
    %v602 = vunpack.c.h.b16 %v152
    %v603 = vunpack.c.l.b16 %v153
    %v604 = vunpack.c.h.b16 %v153
    %v605 = vunpack.c.l.b16 %v154
    %v606 = vunpack.c.h.b16 %v154
    %v607 = vunpack.c.l.b16 %v155
    %v608 = vunpack.c.h.b16 %v155
    %v609 = vunpack.c.l.b16 %v156
    %v610 = vunpack.c.h.b16 %v156
    %v611 = vpack.c.b16 %v357, %v355
    %v612 = vpack.c.b16 %v358, %v356
    %v613 = vpack.c.b16 %v361, %v359
    %v614 = vpack.c.b16 %v362, %v360
    %v615 = vpack.c.b16 %v365, %v363
    %v616 = vpack.c.b16 %v366, %v364
    %v617 = vpack.c.b16 %v369, %v367
    %v618 = vpack.c.b16 %v370, %v368
    %v619 = vpack.c.b16 %v373, %v371
    %v620 = vpack.c.b16 %v374, %v372
    %v621 = vpack.c.b16 %v377, %v375
    %v622 = vpack.c.b16 %v378, %v376
    %v623 = vpack.c.b16 %v381, %v379
    %v624 = vpack.c.b16 %v382, %v380
    %v625 = vpack.c.b16 %v385, %v383
    %v626 = vpack.c.b16 %v386, %v384
    %v627 = vpack.c.b16 %v389, %v387
    %v628 = vpack.c.b16 %v390, %v388
    %v629 = vpack.c.b16 %v393, %v391
    %v630 = vpack.c.b16 %v394, %v392
    %v631 = vpack.c.b16 %v397, %v395
    %v632 = vpack.c.b16 %v398, %v396
    %v633 = vpack.c.b16 %v401, %v399
    %v634 = vpack.c.b16 %v402, %v400
    %v635 = vpack.c.b16 %v405, %v403
    %v636 = vpack.c.b16 %v406, %v404
    %v637 = vpack.c.b16 %v409, %v407
    %v638 = vpack.c.b16 %v410, %v408
    %v639 = vpack.c.b16 %v413, %v411
    %v640 = vpack.c.b16 %v414, %v412
    %v641 = vpack.c.b16 %v417, %v415
    %v642 = vpack.c.b16 %v418, %v416
    %v643 = vpack.c.b16 %v421, %v419
    %v644 = vpack.c.b16 %v422, %v420
    %v645 = vpack.c.b16 %v425, %v423
    %v646 = vpack.c.b16 %v426, %v424
    %v647 = vpack.c.b16 %v429, %v427
    %v648 = vpack.c.b16 %v430, %v428
    %v649 = vpack.c.b16 %v433, %v431
    %v650 = vpack.c.b16 %v434, %v432
    %v651 = vpack.c.b16 %v437, %v435
    %v652 = vpack.c.b16 %v438, %v436
    %v653 = vpack.c.b16 %v441, %v439
    %v654 = vpack.c.b16 %v442, %v440
    %v655 = vpack.c.b16 %v445, %v443
    %v656 = vpack.c.b16 %v446, %v444
    %v657 = vpack.c.b16 %v449, %v447
    %v658 = vpack.c.b16 %v450, %v448
    %v659 = vpack.c.b16 %v453, %v451
    %v660 = vpack.c.b16 %v454, %v452
    %v661 = vpack.c.b16 %v457, %v455
    %v662 = vpack.c.b16 %v458, %v456
    %v663 = vpack.c.b16 %v461, %v459
    %v664 = vpack.c.b16 %v462, %v460
    %v665 = vpack.c.b16 %v465, %v463
    %v666 = vpack.c.b16 %v466, %v464
    %v667 = vpack.c.b16 %v469, %v467
    %v668 = vpack.c.b16 %v470, %v468
    %v669 = vpack.c.b16 %v473, %v471
    %v670 = vpack.c.b16 %v474, %v472
    %v671 = vpack.c.b16 %v477, %v475
    %v672 = vpack.c.b16 %v478, %v476
    %v673 = vpack.c.b16 %v481, %v479
    %v674 = vpack.c.b16 %v482, %v480
    %v675 = vpack.c.b16 %v485, %v483
    %v676 = vpack.c.b16 %v486, %v484
    %v677 = vpack.c.b16 %v489, %v487
    %v678 = vpack.c.b16 %v490, %v488
    %v679 = vpack.c.b16 %v493, %v491
    %v680 = vpack.c.b16 %v494, %v492
    %v681 = vpack.c.b16 %v497, %v495
    %v682 = vpack.c.b16 %v498, %v496
    %v683 = vpack.c.b16 %v501, %v499
    %v684 = vpack.c.b16 %v502, %v500
    %v685 = vpack.c.b16 %v505, %v503
    %v686 = vpack.c.b16 %v506, %v504
    %v687 = vpack.c.b16 %v509, %v507
    %v688 = vpack.c.b16 %v510, %v508
    %v689 = vpack.c.b16 %v513, %v511
    %v690 = vpack.c.b16 %v514, %v512
    %v691 = vpack.c.b16 %v517, %v515
    %v692 = vpack.c.b16 %v518, %v516
    %v693 = vpack.c.b16 %v521, %v519
    %v694 = vpack.c.b16 %v522, %v520
    %v695 = vpack.c.b16 %v525, %v523
    %v696 = vpack.c.b16 %v526, %v524
    %v697 = vpack.c.b16 %v529, %v527
    %v698 = vpack.c.b16 %v530, %v528
    %v699 = vpack.c.b16 %v533, %v531
    %v700 = vpack.c.b16 %v534, %v532
    %v701 = vpack.c.b16 %v537, %v535
    %v702 = vpack.c.b16 %v538, %v536
    %v703 = vpack.c.b16 %v541, %v539
    %v704 = vpack.c.b16 %v542, %v540
    %v705 = vpack.c.b16 %v545, %v543
    %v706 = vpack.c.b16 %v546, %v544
    %v707 = vpack.c.b16 %v549, %v547
    %v708 = vpack.c.b16 %v550, %v548
    %v709 = vpack.c.b16 %v553, %v551
    %v710 = vpack.c.b16 %v554, %v552
    %v711 = vpack.c.b16 %v557, %v555
    %v712 = vpack.c.b16 %v558, %v556
    %v713 = vpack.c.b16 %v561, %v559
    %v714 = vpack.c.b16 %v562, %v560
    %v715 = vpack.c.b16 %v565, %v563
    %v716 = vpack.c.b16 %v566, %v564
    %v717 = vpack.c.b16 %v569, %v567
    %v718 = vpack.c.b16 %v570, %v568
    %v719 = vpack.c.b16 %v573, %v571
    %v720 = vpack.c.b16 %v574, %v572
    %v721 = vpack.c.b16 %v577, %v575
    %v722 = vpack.c.b16 %v578, %v576
    %v723 = vpack.c.b16 %v581, %v579
    %v724 = vpack.c.b16 %v582, %v580
    %v725 = vpack.c.b16 %v585, %v583
    %v726 = vpack.c.b16 %v586, %v584
    %v727 = vpack.c.b16 %v589, %v587
    %v728 = vpack.c.b16 %v590, %v588
    %v729 = vpack.c.b16 %v593, %v591
    %v730 = vpack.c.b16 %v594, %v592
    %v731 = vpack.c.b16 %v597, %v595
    %v732 = vpack.c.b16 %v598, %v596
    %v733 = vpack.c.b16 %v601, %v599
    %v734 = vpack.c.b16 %v602, %v600
    %v735 = vpack.c.b16 %v605, %v603
    %v736 = vpack.c.b16 %v606, %v604
    %v737 = vpack.c.b16 %v609, %v607
    %v738 = vpack.c.b16 %v610, %v608
    %867 = vmatprep.subr.bf16.mxu0 %v612
    %868 = vmatpush1.bf16.msra.mxu0 %v611
    %869 = vmatprep.subr.bf16.mxu0 %v614
    %870 = vmatpush1.bf16.msra.mxu0 %v613
    %871 = vmatprep.subr.bf16.mxu0 %v616
    %872 = vmatpush1.bf16.msra.mxu0 %v615
    %873 = vmatprep.subr.bf16.mxu0 %v618
    %874 = vmatpush1.bf16.msra.mxu0 %v617
    %875 = vmatprep.subr.bf16.mxu0 %v620
    %876 = vmatpush1.bf16.msra.mxu0 %v619
    %877 = vmatprep.subr.bf16.mxu0 %v622
    %878 = vmatpush1.bf16.msra.mxu0 %v621
    %879 = vmatprep.subr.bf16.mxu0 %v624
    %880 = vmatpush1.bf16.msra.mxu0 %v623
    %881 = vmatprep.subr.bf16.mxu0 %v626
    %882 = vmatpush1.bf16.msra.mxu0 %v625
    %883 = vmatprep.subr.bf16.mxu0 %v628
    %884 = vmatpush1.bf16.msra.mxu0 %v627
    %885 = vmatprep.subr.bf16.mxu0 %v630
    %886 = vmatpush1.bf16.msra.mxu0 %v629
    %887 = vmatprep.subr.bf16.mxu0 %v632
    %888 = vmatpush1.bf16.msra.mxu0 %v631
    %889 = vmatprep.subr.bf16.mxu0 %v634
    %890 = vmatpush1.bf16.msra.mxu0 %v633
    %891 = vmatprep.subr.bf16.mxu0 %v636
    %892 = vmatpush1.bf16.msra.mxu0 %v635
    %893 = vmatprep.subr.bf16.mxu0 %v638
    %894 = vmatpush1.bf16.msra.mxu0 %v637
    %895 = vmatprep.subr.bf16.mxu0 %v640
    %896 = vmatpush1.bf16.msra.mxu0 %v639
    %897 = vmatprep.subr.bf16.mxu0 %v642
    %898 = vmatpush1.bf16.msra.mxu0 %v641
    %899 = vmatprep.mubr.bf16.mxu0 %v207
    %900 = vmatmul.mubr.bf16.gmra.mrb[0].mxu0 %v193
    %v901 = vpop.f32.mrb[0].mxu0
    %v902 = vadd.f32 %v162, %v901
    %v903 = vpop.f32.mrb[0].mxu0
    %v904 = vadd.f32 %v166, %v903
    %v905 = vpop.f32.mrb[0].mxu0
    %v906 = vpop.f32.mrb[0].mxu0
    %907 = vdwg.mxu0
    %908 = vmatprep.subr.bf16.mxu0 %v644
    %909 = vmatpush1.bf16.msra.mxu0 %v643
    %910 = vmatprep.subr.bf16.mxu0 %v646
    %911 = vmatpush1.bf16.msra.mxu0 %v645
    %912 = vmatprep.subr.bf16.mxu0 %v648
    %913 = vmatpush1.bf16.msra.mxu0 %v647
    %914 = vmatprep.subr.bf16.mxu0 %v650
    %915 = vmatpush1.bf16.msra.mxu0 %v649
    %916 = vmatprep.subr.bf16.mxu0 %v652
    %917 = vmatpush1.bf16.msra.mxu0 %v651
    %918 = vmatprep.subr.bf16.mxu0 %v654
    %919 = vmatpush1.bf16.msra.mxu0 %v653
    %920 = vmatprep.subr.bf16.mxu0 %v656
    %921 = vmatpush1.bf16.msra.mxu0 %v655
    %922 = vmatprep.subr.bf16.mxu0 %v658
    %923 = vmatpush1.bf16.msra.mxu0 %v657
    %924 = vmatprep.subr.bf16.mxu0 %v660
    %925 = vmatpush1.bf16.msra.mxu0 %v659
    %926 = vmatprep.subr.bf16.mxu0 %v662
    %927 = vmatpush1.bf16.msra.mxu0 %v661
    %928 = vmatprep.subr.bf16.mxu0 %v664
    %929 = vmatpush1.bf16.msra.mxu0 %v663
    %930 = vmatprep.subr.bf16.mxu0 %v666
    %931 = vmatpush1.bf16.msra.mxu0 %v665
    %932 = vmatprep.subr.bf16.mxu0 %v668
    %933 = vmatpush1.bf16.msra.mxu0 %v667
    %934 = vmatprep.subr.bf16.mxu0 %v670
    %935 = vmatpush1.bf16.msra.mxu0 %v669
    %936 = vmatprep.subr.bf16.mxu0 %v672
    %937 = vmatpush1.bf16.msra.mxu0 %v671
    %938 = vmatprep.subr.bf16.mxu0 %v674
    %939 = vmatpush1.bf16.msra.mxu0 %v673
    %940 = vmatprep.mubr.bf16.mxu0 %v217
    %941 = vmatmul.mubr.bf16.gmra.mrb[0].mxu0 %v215
    %v942 = vpop.f32.mrb[0].mxu0
    %v943 = vadd.f32 %v902, %v942
    %v944 = vpop.f32.mrb[0].mxu0
    %v945 = vadd.f32 %v904, %v944
    %v946 = vpop.f32.mrb[0].mxu0
    %v947 = vpop.f32.mrb[0].mxu0
    %948 = vdwg.mxu0
    %949 = vmatprep.subr.bf16.mxu0 %v676
    %950 = vmatpush1.bf16.msra.mxu0 %v675
    %951 = vmatprep.subr.bf16.mxu0 %v678
    %952 = vmatpush1.bf16.msra.mxu0 %v677
    %953 = vmatprep.subr.bf16.mxu0 %v680
    %954 = vmatpush1.bf16.msra.mxu0 %v679
    %955 = vmatprep.subr.bf16.mxu0 %v682
    %956 = vmatpush1.bf16.msra.mxu0 %v681
    %957 = vmatprep.subr.bf16.mxu0 %v684
    %958 = vmatpush1.bf16.msra.mxu0 %v683
    %959 = vmatprep.subr.bf16.mxu0 %v686
    %960 = vmatpush1.bf16.msra.mxu0 %v685
    %961 = vmatprep.subr.bf16.mxu0 %v688
    %962 = vmatpush1.bf16.msra.mxu0 %v687
    %963 = vmatprep.subr.bf16.mxu0 %v690
    %964 = vmatpush1.bf16.msra.mxu0 %v689
    %965 = vmatprep.subr.bf16.mxu0 %v692
    %966 = vmatpush1.bf16.msra.mxu0 %v691
    %967 = vmatprep.subr.bf16.mxu0 %v694
    %968 = vmatpush1.bf16.msra.mxu0 %v693
    %969 = vmatprep.subr.bf16.mxu0 %v696
    %970 = vmatpush1.bf16.msra.mxu0 %v695
    %971 = vmatprep.subr.bf16.mxu0 %v698
    %972 = vmatpush1.bf16.msra.mxu0 %v697
    %973 = vmatprep.subr.bf16.mxu0 %v700
    %974 = vmatpush1.bf16.msra.mxu0 %v699
    %975 = vmatprep.subr.bf16.mxu0 %v702
    %976 = vmatpush1.bf16.msra.mxu0 %v701
    %977 = vmatprep.subr.bf16.mxu0 %v704
    %978 = vmatpush1.bf16.msra.mxu0 %v703
    %979 = vmatprep.subr.bf16.mxu0 %v706
    %980 = vmatpush1.bf16.msra.mxu0 %v705
    %981 = vmatprep.mubr.bf16.mxu0 %v214
    %982 = vmatmul.mubr.bf16.gmra.mrb[0].mxu0 %v200
    %v983 = vpop.f32.mrb[0].mxu0
    %v984 = vadd.f32 %v943, %v983
    %v985 = vpop.f32.mrb[0].mxu0
    %v986 = vadd.f32 %v945, %v985
    %v987 = vpop.f32.mrb[0].mxu0
    %v988 = vpop.f32.mrb[0].mxu0
    %989 = vdwg.mxu0
    %990 = vmatprep.subr.bf16.mxu0 %v708
    %991 = vmatpush1.bf16.msra.mxu0 %v707
    %992 = vmatprep.subr.bf16.mxu0 %v710
    %993 = vmatpush1.bf16.msra.mxu0 %v709
    %994 = vmatprep.subr.bf16.mxu0 %v712
    %995 = vmatpush1.bf16.msra.mxu0 %v711
    %996 = vmatprep.subr.bf16.mxu0 %v714
    %997 = vmatpush1.bf16.msra.mxu0 %v713
    %998 = vmatprep.subr.bf16.mxu0 %v716
    %999 = vmatpush1.bf16.msra.mxu0 %v715
    %1000 = vmatprep.subr.bf16.mxu0 %v718
    %1001 = vmatpush1.bf16.msra.mxu0 %v717
    %1002 = vmatprep.subr.bf16.mxu0 %v720
    %1003 = vmatpush1.bf16.msra.mxu0 %v719
    %1004 = vmatprep.subr.bf16.mxu0 %v722
    %1005 = vmatpush1.bf16.msra.mxu0 %v721
    %1006 = vmatprep.subr.bf16.mxu0 %v724
    %1007 = vmatpush1.bf16.msra.mxu0 %v723
    %1008 = vmatprep.subr.bf16.mxu0 %v726
    %1009 = vmatpush1.bf16.msra.mxu0 %v725
    %1010 = vmatprep.subr.bf16.mxu0 %v728
    %1011 = vmatpush1.bf16.msra.mxu0 %v727
    %1012 = vmatprep.subr.bf16.mxu0 %v730
    %1013 = vmatpush1.bf16.msra.mxu0 %v729
    %1014 = vmatprep.subr.bf16.mxu0 %v732
    %1015 = vmatpush1.bf16.msra.mxu0 %v731
    %1016 = vmatprep.subr.bf16.mxu0 %v734
    %1017 = vmatpush1.bf16.msra.mxu0 %v733
    %1018 = vmatprep.subr.bf16.mxu0 %v736
    %1019 = vmatpush1.bf16.msra.mxu0 %v735
    %1020 = vmatprep.subr.bf16.mxu0 %v738
    %1021 = vmatpush1.bf16.msra.mxu0 %v737
    %1022 = vmatprep.mubr.bf16.mxu0 %v218
    %1023 = vmatmul.mubr.bf16.gmra.mrb[0].mxu0 %v216
    %v1024 = vpop.f32.mrb[0].mxu0
    %v1025 = vadd.f32 %v984, %v1024
    %v1026 = vpop.f32.mrb[0].mxu0
    %v1027 = vadd.f32 %v986, %v1026
    %v1028 = vpop.f32.mrb[0].mxu0
    %v1029 = vpop.f32.mrb[0].mxu0
    %1030 = vdwg.mxu0
    %v1031 = vld [vmem:[%s3] sm:$0xf]
    %v1032 = vld [vmem:[%s3 + $0x4] sm:$0xf]
    %v1033 = vld [vmem:[%s3 + $0x8] sm:$0xf]
    %v1034 = vld [vmem:[%s3 + $0xc] sm:$0xf]
    %v1035 = vld [vmem:[%s3 + $0x10] sm:$0xf]
    %v1036 = vld [vmem:[%s3 + $0x14] sm:$0xf]
    %v1037 = vld [vmem:[%s3 + $0x18] sm:$0xf]
    %v1038 = vld [vmem:[%s3 + $0x1c] sm:$0xf]
    %v1039 = vld [vmem:[%s3 + $0x20] sm:$0xf]
    %v1040 = vld [vmem:[%s3 + $0x24] sm:$0xf]
    %v1041 = vld [vmem:[%s3 + $0x28] sm:$0xf]
    %v1042 = vld [vmem:[%s3 + $0x2c] sm:$0xf]
    %v1043 = vld [vmem:[%s3 + $0x30] sm:$0xf]
    %v1044 = vld [vmem:[%s3 + $0x34] sm:$0xf]
    %v1045 = vld [vmem:[%s3 + $0x38] sm:$0xf]
    %v1046 = vld [vmem:[%s3 + $0x3c] sm:$0xf]
    %v1047 = vld [vmem:[%s3 + $0x40] sm:$0xf]
    %v1048 = vld [vmem:[%s3 + $0x44] sm:$0xf]
    %v1049 = vld [vmem:[%s3 + $0x48] sm:$0xf]
    %v1050 = vld [vmem:[%s3 + $0x4c] sm:$0xf]
    %v1051 = vld [vmem:[%s3 + $0x50] sm:$0xf]
    %v1052 = vld [vmem:[%s3 + $0x54] sm:$0xf]
    %v1053 = vld [vmem:[%s3 + $0x58] sm:$0xf]
    %v1054 = vld [vmem:[%s3 + $0x5c] sm:$0xf]
    %v1055 = vld [vmem:[%s3 + $0x60] sm:$0xf]
    %v1056 = vld [vmem:[%s3 + $0x64] sm:$0xf]
    %v1057 = vld [vmem:[%s3 + $0x68] sm:$0xf]
    %v1058 = vld [vmem:[%s3 + $0x6c] sm:$0xf]
    %v1059 = vld [vmem:[%s3 + $0x70] sm:$0xf]
    %v1060 = vld [vmem:[%s3 + $0x74] sm:$0xf]
    %v1061 = vld [vmem:[%s3 + $0x78] sm:$0xf]
    %v1062 = vld [vmem:[%s3 + $0x7c] sm:$0xf]
    %v1063 = vld [vmem:[%s4] sm:$0x1]
    %v1064 = vpack.c.bf16 %v1025, %v1025
    %v1065 = vpack.c.bf16 %v1027, %v1027
    %v1067 = vlaneseq
    %v1068 = vshrl.u32 %v1067, 7
    %v1069 = vsub.s32 0, %v1068
    %v1070 = vrot.slane %v1063, %v1069
    %v1104 = vunpack.c.l.b16 %v1031
    %v1105 = vunpack.c.l.b16 %v1032
    %v1106 = vunpack.c.l.b16 %v1033
    %v1107 = vunpack.c.l.b16 %v1034
    %v1108 = vunpack.c.l.b16 %v1035
    %v1109 = vunpack.c.l.b16 %v1036
    %v1110 = vunpack.c.l.b16 %v1037
    %v1111 = vunpack.c.l.b16 %v1038
    %v1112 = vunpack.c.l.b16 %v1039
    %v1113 = vunpack.c.l.b16 %v1040
    %v1114 = vunpack.c.l.b16 %v1041
    %v1115 = vunpack.c.l.b16 %v1042
    %v1116 = vunpack.c.l.b16 %v1043
    %v1117 = vunpack.c.l.b16 %v1044
    %v1118 = vunpack.c.l.b16 %v1045
    %v1119 = vunpack.c.l.b16 %v1046
    %v1120 = vunpack.c.l.b16 %v1047
    %v1121 = vunpack.c.l.b16 %v1048
    %v1122 = vunpack.c.l.b16 %v1049
    %v1123 = vunpack.c.l.b16 %v1050
    %v1124 = vunpack.c.l.b16 %v1051
    %v1125 = vunpack.c.l.b16 %v1052
    %v1126 = vunpack.c.l.b16 %v1053
    %v1127 = vunpack.c.l.b16 %v1054
    %v1128 = vunpack.c.l.b16 %v1055
    %v1129 = vunpack.c.l.b16 %v1056
    %v1130 = vunpack.c.l.b16 %v1057
    %v1131 = vunpack.c.l.b16 %v1058
    %v1132 = vunpack.c.l.b16 %v1059
    %v1133 = vunpack.c.l.b16 %v1060
    %v1134 = vunpack.c.l.b16 %v1061
    %v1135 = vunpack.c.l.b16 %v1062
    %v1136 = vpack.c.b16 %v1105, %v1104
    %v1137 = vpack.c.b16 %v1107, %v1106
    %v1138 = vpack.c.b16 %v1109, %v1108
    %v1139 = vpack.c.b16 %v1111, %v1110
    %v1140 = vpack.c.b16 %v1113, %v1112
    %v1141 = vpack.c.b16 %v1115, %v1114
    %v1142 = vpack.c.b16 %v1117, %v1116
    %v1143 = vpack.c.b16 %v1119, %v1118
    %v1144 = vpack.c.b16 %v1121, %v1120
    %v1145 = vpack.c.b16 %v1123, %v1122
    %v1146 = vpack.c.b16 %v1125, %v1124
    %v1147 = vpack.c.b16 %v1127, %v1126
    %v1148 = vpack.c.b16 %v1129, %v1128
    %v1149 = vpack.c.b16 %v1131, %v1130
    %v1150 = vpack.c.b16 %v1133, %v1132
    %v1151 = vpack.c.b16 %v1135, %v1134
    %1168 = vmatprep.subr.bf16.mxu0 0
    %1169 = vmatpush1.bf16.msra.mxu0 %v1136
    %1170 = vmatprep.subr.bf16.mxu0 0
    %1171 = vmatpush1.bf16.msra.mxu0 %v1137
    %1172 = vmatprep.subr.bf16.mxu0 0
    %1173 = vmatpush1.bf16.msra.mxu0 %v1138
    %1174 = vmatprep.subr.bf16.mxu0 0
    %1175 = vmatpush1.bf16.msra.mxu0 %v1139
    %1176 = vmatprep.subr.bf16.mxu0 0
    %1177 = vmatpush1.bf16.msra.mxu0 %v1140
    %1178 = vmatprep.subr.bf16.mxu0 0
    %1179 = vmatpush1.bf16.msra.mxu0 %v1141
    %1180 = vmatprep.subr.bf16.mxu0 0
    %1181 = vmatpush1.bf16.msra.mxu0 %v1142
    %1182 = vmatprep.subr.bf16.mxu0 0
    %1183 = vmatpush1.bf16.msra.mxu0 %v1143
    %1184 = vmatprep.subr.bf16.mxu0 0
    %1185 = vmatpush1.bf16.msra.mxu0 %v1144
    %1186 = vmatprep.subr.bf16.mxu0 0
    %1187 = vmatpush1.bf16.msra.mxu0 %v1145
    %1188 = vmatprep.subr.bf16.mxu0 0
    %1189 = vmatpush1.bf16.msra.mxu0 %v1146
    %1190 = vmatprep.subr.bf16.mxu0 0
    %1191 = vmatpush1.bf16.msra.mxu0 %v1147
    %1192 = vmatprep.subr.bf16.mxu0 0
    %1193 = vmatpush1.bf16.msra.mxu0 %v1148
    %1194 = vmatprep.subr.bf16.mxu0 0
    %1195 = vmatpush1.bf16.msra.mxu0 %v1149
    %1196 = vmatprep.subr.bf16.mxu0 0
    %1197 = vmatpush1.bf16.msra.mxu0 %v1150
    %1198 = vmatprep.subr.bf16.mxu0 0
    %1199 = vmatpush1.bf16.msra.mxu0 %v1151
    %1200 = vmatprep.mubr.bf16.mxu0 %v1065
    %1201 = vmatmul.mubr.bf16.gmra.mrb[0].mxu0 %v1064
    %v1202 = vpop.f32.mrb[0].mxu0
    %v1203 = vadd.f32 %v1070, %v1202
    %v1204 = vpop.f32.mrb[0].mxu0
    %v1205 = vpop.f32.mrb[0].mxu0
    %v1206 = vpop.f32.mrb[0].mxu0
    %1207 = vdwg.mxu0
    %v1208 = vld [vmem:[%s5] sm:$0xf]
    %v1209 = vld [vmem:[%s5 + $0x4] sm:$0xf]
    %v1210 = vld [vmem:[%s5 + $0x8] sm:$0xf]
    %v1211 = vld [vmem:[%s5 + $0xc] sm:$0xf]
    %v1212 = vld [vmem:[%s5 + $0x10] sm:$0xf]
    %v1213 = vld [vmem:[%s5 + $0x14] sm:$0xf]
    %v1214 = vld [vmem:[%s5 + $0x18] sm:$0xf]
    %v1215 = vld [vmem:[%s5 + $0x1c] sm:$0xf]
    %v1216 = vld [vmem:[%s5 + $0x20] sm:$0xf]
    %v1217 = vld [vmem:[%s5 + $0x24] sm:$0xf]
    %v1218 = vld [vmem:[%s5 + $0x28] sm:$0xf]
    %v1219 = vld [vmem:[%s5 + $0x2c] sm:$0xf]
    %v1220 = vld [vmem:[%s5 + $0x30] sm:$0xf]
    %v1221 = vld [vmem:[%s5 + $0x34] sm:$0xf]
    %v1222 = vld [vmem:[%s5 + $0x38] sm:$0xf]
    %v1223 = vld [vmem:[%s5 + $0x3c] sm:$0xf]
    %v1224 = vld [vmem:[%s6] sm:$0x1]
    %v1225 = vpack.c.bf16 %v1203, %v1203
    %v1227 = vlaneseq
    %v1228 = vshrl.u32 %v1227, 7
    %v1229 = vsub.s32 0, %v1228
    %v1230 = vrot.slane %v1224, %v1229
    %v1248 = vunpack.c.l.b16 %v1208
    %v1249 = vunpack.c.l.b16 %v1209
    %v1250 = vunpack.c.l.b16 %v1210
    %v1251 = vunpack.c.l.b16 %v1211
    %v1252 = vunpack.c.l.b16 %v1212
    %v1253 = vunpack.c.l.b16 %v1213
    %v1254 = vunpack.c.l.b16 %v1214
    %v1255 = vunpack.c.l.b16 %v1215
    %v1256 = vunpack.c.l.b16 %v1216
    %v1257 = vunpack.c.l.b16 %v1217
    %v1258 = vunpack.c.l.b16 %v1218
    %v1259 = vunpack.c.l.b16 %v1219
    %v1260 = vunpack.c.l.b16 %v1220
    %v1261 = vunpack.c.l.b16 %v1221
    %v1262 = vunpack.c.l.b16 %v1222
    %v1263 = vunpack.c.l.b16 %v1223
    %v1264 = vpack.c.b16 %v1249, %v1248
    %v1265 = vpack.c.b16 %v1251, %v1250
    %v1266 = vpack.c.b16 %v1253, %v1252
    %v1267 = vpack.c.b16 %v1255, %v1254
    %v1268 = vpack.c.b16 %v1257, %v1256
    %v1269 = vpack.c.b16 %v1259, %v1258
    %v1270 = vpack.c.b16 %v1261, %v1260
    %v1271 = vpack.c.b16 %v1263, %v1262
    %1280 = vmatprep.subr.bf16.mxu0 0
    %1281 = vmatpush1.bf16.msra.mxu0 %v1264
    %1282 = vmatprep.subr.bf16.mxu0 0
    %1283 = vmatpush1.bf16.msra.mxu0 %v1265
    %1284 = vmatprep.subr.bf16.mxu0 0
    %1285 = vmatpush1.bf16.msra.mxu0 %v1266
    %1286 = vmatprep.subr.bf16.mxu0 0
    %1287 = vmatpush1.bf16.msra.mxu0 %v1267
    %1288 = vmatprep.subr.bf16.mxu0 0
    %1289 = vmatpush1.bf16.msra.mxu0 %v1268
    %1290 = vmatprep.subr.bf16.mxu0 0
    %1291 = vmatpush1.bf16.msra.mxu0 %v1269
    %1292 = vmatprep.subr.bf16.mxu0 0
    %1293 = vmatpush1.bf16.msra.mxu0 %v1270
    %1294 = vmatprep.subr.bf16.mxu0 0
    %1295 = vmatpush1.bf16.msra.mxu0 %v1271
    %1296 = vmatprep.subr.bf16.mxu0 0
    %1297 = vmatpush1.bf16.msra.mxu0 0
    %1298 = vmatprep.subr.bf16.mxu0 0
    %1299 = vmatpush1.bf16.msra.mxu0 0
    %1300 = vmatprep.subr.bf16.mxu0 0
    %1301 = vmatpush1.bf16.msra.mxu0 0
    %1302 = vmatprep.subr.bf16.mxu0 0
    %1303 = vmatpush1.bf16.msra.mxu0 0
    %1304 = vmatprep.subr.bf16.mxu0 0
    %1305 = vmatpush1.bf16.msra.mxu0 0
    %1306 = vmatprep.subr.bf16.mxu0 0
    %1307 = vmatpush1.bf16.msra.mxu0 0
    %1308 = vmatprep.subr.bf16.mxu0 0
    %1309 = vmatpush1.bf16.msra.mxu0 0
    %1310 = vmatprep.subr.bf16.mxu0 0
    %1311 = vmatpush1.bf16.msra.mxu0 0
    %1312 = vmatprep.mubr.bf16.mxu0 0
    %1313 = vmatmul.mubr.bf16.gmra.mrb[0].mxu0 %v1225
    %v1314 = vpop.f32.mrb[0].mxu0
    %v1315 = vadd.f32 %v1230, %v1314
    %v1316 = vpop.f32.mrb[0].mxu0
    %v1317 = vpop.f32.mrb[0].mxu0
    %v1318 = vpop.f32.mrb[0].mxu0
    %1319 = vdwg.mxu0
    %v1320 = vmax.f32 %v1315, 0.0
    %1321 = vst [vmem:[#allocation2] sm:$0x3] %v1320
    // Predicated region
    $region30: #{decoder_forward.1} parent=1 // pred_check
      _
    $region31: #{decoder_forward.1} parent=1 // pred_check_branch
      %1323 = sbr.rel (0) target = $region33
    $region32: #{decoder_forward.1} parent=1 // pred_region
      %s1325 = ssub.s32 32, 32
      %1326 = vsyncadd [#allocation3], %s1325
      %s1328 = sshll.u32 [#allocation2], 4
      %s1329 = int_to_ptr.vmem [resolvable:$true] %s1328
      %1331 = dma.vmem_to_hbm [thread:$0]  %s1329, 32, %s7, [#allocation3]
    $region33: #{decoder_forward.1} parent=1 // pred_fallthru
      _
    // Predicated region
    $region34: #{decoder_forward.1} parent=1 // pred_check
      _
    $region35: #{decoder_forward.1} parent=1 // pred_check_branch
      %1333 = sbr.rel (0) target = $region37
    $region36: #{decoder_forward.1} parent=1 // pred_region
      %1334 = dma.done [#allocation3], 32
    $region37: #{decoder_forward.1} parent=1 // pred_fallthru
      _
    %1335 = vsyncpa [#allocation3], 1

</llo_original>
